<compile_context>
chip_gen: v6e
topology: v6e:2x2x1
jax: 0.10.0
libtpu: 0.0.40
codegen_flags: <defaults>
</compile_context>

<pallas_src>
import functools

import jax
import jax.numpy as jnp
from jax.experimental import pallas as pl
from jax.experimental.pallas import tpu as pltpu


# ---------------------------------------------------------------------------
# Fused kernel: masked softmax-BCE partial sum per row tile; tiny
# moment-matching epilogue computed on the last inner grid step.
# ---------------------------------------------------------------------------
def _make_vae_loss_kernel(n_valid_rows, tile, n_inner):
    def kernel(logits_ref, target_ref, mu_ref, bce_ref, mom_ref):
        c = pl.program_id(0)          # TensorCore split (parallel)
        i = pl.program_id(1)          # row-tile loop (arbitrary / reduction)

        @pl.when(i == 0)
        def _():
            bce_ref[...] = jnp.zeros_like(bce_ref)

        x = logits_ref[...].astype(jnp.float32)
        t = target_ref[...].astype(jnp.float32)

        # log-softmax over the vocab (lane) dim.
        #   log p      = (x - m) - log(s)
        #   log(1 - p) = log(s - e) - log(s)      (no explicit p, no reciprocal)
        m = jnp.max(x, axis=-1, keepdims=True)
        xm = x - m
        e = jnp.exp(xm)
        s = jnp.sum(e, axis=-1, keepdims=True)
        log_s = jnp.log(s)
        log_p = jnp.maximum(xm - log_s, -100.0)                 # PyTorch clamp
        log_1mp = jnp.maximum(jnp.log(jnp.maximum(s - e, 0.0)) - log_s, -100.0)
        # -(t*log_p + (1-t)*log_1mp) refactored to drop one full-size mul.
        bce = -(log_1mp + t * (log_p - log_1mp))

        # Per-row sums, mask rows past the end of the (unpadded) input, then
        # fold the whole tile into one scalar added to the resident output.
        row_sum = jnp.sum(bce, axis=-1, keepdims=True)          # (TILE, 1)
        row_base = (c * n_inner + i) * tile
        row_ids = jax.lax.broadcasted_iota(jnp.int32, (tile, 1), 0) + row_base
        row_sum = jnp.where(row_ids < n_valid_rows, row_sum, 0.0)
        bce_ref[...] += jnp.sum(row_sum)

        @pl.when(i == pl.num_programs(1) - 1)
        def _():
            # Moment-matching error on mu (tiny: (B, Z)); recomputed by each
            # core so every output block it owns is written (wrapper reads [0]).
            # TODO(synk): for very large B, stream mu in batch tiles into a
            # (Z, Z) accumulator instead of holding the whole (B, Z) resident.
            mu = mu_ref[...].astype(jnp.float32)
            b = mu.shape[0]
            z = mu.shape[1]
            avg_mu = jnp.sum(mu, axis=0) / b                    # (Z,)
            # var = mu.T @ mu / B  (contract over batch dim; no transpose)
            var = jax.lax.dot_general(
                mu, mu, (((0,), (0,)), ((), ())),
                preferred_element_type=jnp.float32) / b         # (Z, Z)
            var_err = var - jnp.eye(z, dtype=jnp.float32)
            var_err = jnp.tanh(var_err) * var_err
            mom = jnp.sum(avg_mu * avg_mu) / z + jnp.sum(var_err) / (z * z)
            mom_ref[...] = jnp.full((1, 1), mom, dtype=jnp.float32)

    return kernel


def _vmem_capacity_bytes():
    try:
        return int(pltpu.get_tpu_info().vmem_capacity_bytes)
    except Exception:
        return 64 * 1024 * 1024          # conservative fallback (v7x-sized)


def _choose_tile(n_rows, v, in_itemsize, mu_resident_bytes, budget):
    """Largest 8-aligned row tile whose real VMEM working set fits `budget`.

    Working set per tile row:
      * 2 streamed inputs x 2 pipeline buffers at native dtype, and
      * ~5 full-tile f32 temporaries (x, t, e, log_p, bce) forced by the
        lane-dim max/sum,
    plus the resident (double-buffered) mu block and ~1 MiB slack.
    """
    v_pad = max(pl.cdiv(v, 128) * 128, 128)                   # lane padding
    per_row = v_pad * (2 * 2 * in_itemsize + 5 * 4)
    avail = budget - 2 * mu_resident_bytes - (1 << 20)
    tile = max(avail, 8 * per_row) // per_row
    tile = int(min(tile, 8192))                               # MiB-scale DMAs
    tile = max((tile // 8) * 8, 8)
    tile = min(tile, max(int(pl.cdiv(n_rows, 8) * 8), 8))     # no oversizing
    return int(tile)


# ---------------------------------------------------------------------------
# Wrapper
# ---------------------------------------------------------------------------
@functools.partial(jax.jit,
                   static_argnames=("reg_weight", "training", "tile_rows"))
def vae_loss(model_out_x, mu, log_var, target_x, *, reg_weight=0.01,
             training=True, tile_rows=None):
    """Returns (loss, BCE, mom_err) as float32 scalars."""
    del log_var  # only used by the sample_z=True (KLD) branch
    B, S, V = model_out_x.shape
    Z = mu.shape[1]
    N = B * S

    # No padding: ragged last tile is masked in-kernel.
    logits2d = model_out_x.reshape(N, V)
    target2d = target_x.reshape(N, V)

    cap = _vmem_capacity_bytes()
    vmem_limit = min(int(cap * 3 // 4), cap - 8 * 1024 * 1024)
    budget = vmem_limit // 2

    mu_bytes = ((pl.cdiv(B, 8) * 8) * (pl.cdiv(Z, 128) * 128)
                * jnp.dtype(mu.dtype).itemsize)
    TILE = _choose_tile(N, V, jnp.dtype(model_out_x.dtype).itemsize,
                        mu_bytes, budget)
    if tile_rows is not None:                  # test / tuning override
        TILE = max(8, min(TILE, (int(tile_rows) // 8) * 8))

    n_blocks = pl.cdiv(N, TILE)
    n_split = 2 if n_blocks >= 2 else 1        # 2 TCs on v7x; harmless on 1-TC
    n_inner = pl.cdiv(n_blocks, n_split)

    # Phantom tiles (when n_split * n_inner > n_blocks) are clamped to the last
    # valid block for the DMA; their contribution is zeroed by the row mask.
    def stream_map(c, i):
        return (jnp.minimum(c * n_inner + i, n_blocks - 1), 0)

    kernel = _make_vae_loss_kernel(N, TILE, n_inner)

    bce_parts, mom_parts = pl.pallas_call(
        kernel,
        out_shape=(jax.ShapeDtypeStruct((n_split, 1), jnp.float32),
                   jax.ShapeDtypeStruct((n_split, 1), jnp.float32)),
        grid_spec=pltpu.PrefetchScalarGridSpec(
            num_scalar_prefetch=0,
            grid=(n_split, n_inner),
            in_specs=[
                # TODO(synk): lane-pack 128//V rows per vreg when V < 128
                # (needs a segmented lane reduction; skipped to avoid in-kernel
                # relayouts). TODO(synk): optional index-based one-hot targets
                # would halve HBM traffic but changes the module interface.
                pl.BlockSpec((TILE, V), stream_map),
                pl.BlockSpec((TILE, V), stream_map),
                pl.BlockSpec((B, Z), lambda c, i: (0, 0)),      # resident mu
            ],
            out_specs=[
                pl.BlockSpec((1, 1), lambda c, i: (c, 0)),
                pl.BlockSpec((1, 1), lambda c, i: (c, 0)),
            ],
        ),
        compiler_params=pltpu.CompilerParams(
            dimension_semantics=("parallel", "arbitrary"),
            vmem_limit_bytes=int(vmem_limit)),
    )(logits2d, target2d, mu)

    bce_sum = jnp.sum(bce_parts)               # combine per-core partials
    mom_err = mom_parts[0, 0]

    # BCELoss(size_average=True) == mean over all elements; times seq_len.
    bce = S * (bce_sum / (N * V))

    # TODO(synk): sample_z=True branch (KLD term) not implemented; the default
    # constructor uses sample_z=False so it is not exercised here.
    if training:
        loss = bce + reg_weight * mom_err
    else:
        loss = bce
    return loss, bce, mom_err


# ---------------------------------------------------------------------------
# Pure-JAX reference for verification
# ---------------------------------------------------------------------------
def vae_loss_ref(model_out_x, mu, log_var, target_x, reg_weight=0.01):
    B, S, V = model_out_x.shape
    Z = mu.shape[1]
    p = jax.nn.softmax(model_out_x.astype(jnp.float32), axis=2)
    t = target_x.astype(jnp.float32)
    log_p = jnp.maximum(jnp.log(p), -100.0)
    log_1mp = jnp.maximum(jnp.log1p(-p), -100.0)
    bce = S * jnp.mean(-(t * log_p + (1.0 - t) * log_1mp))
    avg_mu = jnp.sum(mu.astype(jnp.float32), axis=0) / B
    var = (mu.T.astype(jnp.float32) @ mu.astype(jnp.float32)) / B
    var_err = var - jnp.eye(Z, dtype=jnp.float32)
    var_err = jnp.tanh(var_err) * var_err
    mom_err = jnp.sum(avg_mu * avg_mu) / Z + jnp.sum(var_err) / (Z * Z)
    return bce + reg_weight * mom_err, bce, mom_err


if __name__ == "__main__":
    # --- Test 1: shapes consistent with the module's forward ----------------
    #   model_out_x, target_x : (B, S, V);  mu, log_var : (B, Z)
    B, S, V, Z = 4, 8, 32, 16
    key = jax.random.PRNGKey(0)
    k1, k2, k3, k4 = jax.random.split(key, 4)

    model_out_x = jax.random.normal(k1, (B, S, V), dtype=jnp.float32)
    mu = jax.random.normal(k2, (B, Z), dtype=jnp.float32)
    log_var = jax.random.normal(k3, (B, Z), dtype=jnp.float32)
    tgt_idx = jax.random.randint(k4, (B, S), 0, V)
    target_x = jax.nn.one_hot(tgt_idx, V, dtype=jnp.float32)

    loss, bce, mom_err = vae_loss(model_out_x, mu, log_var, target_x,
                                  reg_weight=0.01, training=True)
    jax.block_until_ready(loss)

    ref_loss, ref_bce, ref_me = vae_loss_ref(model_out_x, mu, log_var,
                                             target_x, reg_weight=0.01)
    assert jnp.allclose(loss, ref_loss, rtol=1e-4, atol=1e-5), (loss, ref_loss)
    assert jnp.allclose(bce, ref_bce, rtol=1e-4, atol=1e-5), (bce, ref_bce)
    assert jnp.allclose(mom_err, ref_me, rtol=1e-4, atol=1e-5), (mom_err, ref_me)

    # Eval mode: loss == BCE only.
    ev_loss, ev_bce, _ = vae_loss(model_out_x, mu, log_var, target_x,
                                  reg_weight=0.01, training=False)
    jax.block_until_ready(ev_loss)
    assert jnp.allclose(ev_loss, ev_bce, rtol=1e-6, atol=1e-6)

    # --- Test 2: ragged row count + forced small tile to exercise the
    #     multi-tile, two-partial and phantom-tile paths ----------------------
    B2, S2, V2, Z2 = 3, 50, 40, 24
    j1, j2, j3, j4 = jax.random.split(jax.random.PRNGKey(1), 4)
    logits2 = jax.random.normal(j1, (B2, S2, V2), dtype=jnp.float32)
    mu2 = jax.random.normal(j2, (B2, Z2), dtype=jnp.float32)
    log_var2 = jax.random.normal(j3, (B2, Z2), dtype=jnp.float32)
    target2 = jax.random.uniform(j4, (B2, S2, V2), dtype=jnp.float32)

    l2, b2, m2 = vae_loss(logits2, mu2, log_var2, target2,
                          reg_weight=0.01, training=True, tile_rows=32)
    jax.block_until_ready(l2)
    rl2, rb2, rm2 = vae_loss_ref(logits2, mu2, log_var2, target2,
                                 reg_weight=0.01)
    assert jnp.allclose(l2, rl2, rtol=1e-4, atol=1e-5), (l2, rl2)
    assert jnp.allclose(b2, rb2, rtol=1e-4, atol=1e-5), (b2, rb2)
    assert jnp.allclose(m2, rm2, rtol=1e-4, atol=1e-5), (m2, rm2)

    print("KERNEL_OK")
</pallas_src>

<mosaic_0001>
module attributes {stable_mosaic.version = 11 : i64} {
  func.func @kernel(%arg0: i32, %arg1: i32, %arg2: memref<32x32xf32, #tpu.memory_space<vmem>>, %arg3: memref<32x32xf32, #tpu.memory_space<vmem>>, %arg4: memref<4x16xf32, #tpu.memory_space<vmem>>, %arg5: memref<1x1xf32, #tpu.memory_space<vmem>>, %arg6: memref<1x1xf32, #tpu.memory_space<vmem>>) attributes {dimension_semantics = [#tpu.dimension_semantics<parallel>, #tpu.dimension_semantics<arbitrary>], iteration_bounds = array<i64: 1, 1>, scalar_prefetch = 0 : i64, scratch_operands = 0 : i64, tpu.core_type = #tpu.core_type<tc>, window_params = [{transform_indices = @transform_0, window_bounds = array<i64: 32, 32>}, {transform_indices = @transform_1, window_bounds = array<i64: 32, 32>}, {pipeline_mode = #tpu.pipeline_mode<synchronous>, transform_indices = @transform_2, window_bounds = array<i64: 4, 16>}, {transform_indices = @transform_3, window_bounds = array<i64: 1, 1>}, {transform_indices = @transform_4, window_bounds = array<i64: 1, 1>}]} {
    %c0_i32 = arith.constant 0 : i32
    %0 = arith.cmpi eq, %arg1, %c0_i32 : i32
    %1 = arith.extui %0 : i1 to i32
    %c0_i32_0 = arith.constant 0 : i32
    %2 = arith.cmpi ne, %1, %c0_i32_0 : i32
    scf.if %2 {
      %cst_19 = arith.constant 0.000000e+00 : f32
      %54 = vector.broadcast %cst_19 : f32 to vector<1x1xf32>
      %c0_20 = arith.constant 0 : index
      %c0_21 = arith.constant 0 : index
      %55 = vector.load %arg5[%c0_20, %c0_21] : memref<1x1xf32, #tpu.memory_space<vmem>>, vector<1x1xf32>
      tpu.vector_store %arg5[%c0_20, %c0_21], %54 {strides = array<i32>} : memref<1x1xf32, #tpu.memory_space<vmem>>, vector<1x1xf32>,
    } else {
    }
    %c0 = arith.constant 0 : index
    %c0_1 = arith.constant 0 : index
    %3 = vector.load %arg2[%c0, %c0_1] : memref<32x32xf32, #tpu.memory_space<vmem>>, vector<32x32xf32>
    %c0_2 = arith.constant 0 : index
    %c0_3 = arith.constant 0 : index
    %4 = vector.load %arg3[%c0_2, %c0_3] : memref<32x32xf32, #tpu.memory_space<vmem>>, vector<32x32xf32>
    %cst = arith.constant dense<0xFF800000> : vector<32xf32>
    %5 = vector.multi_reduction <maximumf>, %3, %cst [1] : vector<32x32xf32> to vector<32xf32>
    %6 = vector.shape_cast %5 : vector<32xf32> to vector<32x1xf32>
    %7 = vector.broadcast %6 : vector<32x1xf32> to vector<32x32xf32>
    %8 = arith.subf %3, %7 : vector<32x32xf32>
    %9 = math.exp %8 : vector<32x32xf32>
    %cst_4 = arith.constant dense<0.000000e+00> : vector<32xf32>
    %10 = vector.multi_reduction <add>, %9, %cst_4 [1] : vector<32x32xf32> to vector<32xf32>
    %11 = vector.shape_cast %10 : vector<32xf32> to vector<32x1xf32>
    %12 = math.log %11 : vector<32x1xf32>
    %13 = vector.broadcast %12 : vector<32x1xf32> to vector<32x32xf32>
    %14 = arith.subf %8, %13 : vector<32x32xf32>
    %cst_5 = arith.constant -1.000000e+02 : f32
    %15 = vector.broadcast %cst_5 : f32 to vector<32x32xf32>
    %16 = arith.maximumf %14, %15 : vector<32x32xf32>
    %17 = vector.broadcast %11 : vector<32x1xf32> to vector<32x32xf32>
    %18 = arith.subf %17, %9 : vector<32x32xf32>
    %cst_6 = arith.constant 0.000000e+00 : f32
    %19 = vector.broadcast %cst_6 : f32 to vector<32x32xf32>
    %20 = arith.maximumf %18, %19 : vector<32x32xf32>
    %21 = math.log %20 : vector<32x32xf32>
    %22 = vector.broadcast %12 : vector<32x1xf32> to vector<32x32xf32>
    %23 = arith.subf %21, %22 : vector<32x32xf32>
    %cst_7 = arith.constant -1.000000e+02 : f32
    %24 = vector.broadcast %cst_7 : f32 to vector<32x32xf32>
    %25 = arith.maximumf %23, %24 : vector<32x32xf32>
    %26 = arith.subf %16, %25 : vector<32x32xf32>
    %27 = arith.mulf %4, %26 : vector<32x32xf32>
    %28 = arith.addf %25, %27 : vector<32x32xf32>
    %cst_8 = arith.constant 0.000000e+00 : f32
    %29 = vector.broadcast %cst_8 : f32 to vector<32x32xf32>
    %30 = arith.subf %29, %28 : vector<32x32xf32>
    %cst_9 = arith.constant dense<0.000000e+00> : vector<32xf32>
    %31 = vector.multi_reduction <add>, %30, %cst_9 [1] : vector<32x32xf32> to vector<32xf32>
    %32 = vector.shape_cast %31 : vector<32xf32> to vector<32x1xf32>
    %c1_i32 = arith.constant 1 : i32
    %33 = arith.muli %arg0, %c1_i32 : i32
    %34 = arith.addi %33, %arg1 : i32
    %c32_i32 = arith.constant 32 : i32
    %35 = arith.muli %34, %c32_i32 : i32
    %36 = tpu.iota {dimensions = array<i32: 0>} : vector<32x1xi32>
    %37 = vector.broadcast %35 : i32 to vector<32x1xi32>
    %38 = arith.addi %36, %37 : vector<32x1xi32>
    %c32_i32_10 = arith.constant 32 : i32
    %39 = vector.broadcast %c32_i32_10 : i32 to vector<32x1xi32>
    %40 = arith.cmpi slt, %38, %39 : vector<32x1xi32>
    %cst_11 = arith.constant 0.000000e+00 : f32
    %41 = vector.broadcast %cst_11 : f32 to vector<32x1xf32>
    %42 = arith.select %40, %32, %41 : vector<32x1xi1>, vector<32x1xf32>
    %c0_12 = arith.constant 0 : index
    %c0_13 = arith.constant 0 : index
    %43 = vector.load %arg5[%c0_12, %c0_13] : memref<1x1xf32, #tpu.memory_space<vmem>>, vector<1x1xf32>
    %44 = vector.shape_cast %42 : vector<32x1xf32> to vector<1x32x1xf32>
    %cst_14 = arith.constant dense<0.000000e+00> : vector<1xf32>
    %45 = vector.multi_reduction <add>, %44, %cst_14 [1, 2] : vector<1x32x1xf32> to vector<1xf32>
    %46 = vector.shape_cast %45 : vector<1xf32> to vector<1x1x1xf32>
    %47 = vector.extract %46[0, 0, 0] : f32 from vector<1x1x1xf32>
    %48 = vector.broadcast %47 : f32 to vector<1x1xf32>
    %49 = arith.addf %43, %48 : vector<1x1xf32>
    %c0_15 = arith.constant 0 : index
    %c0_16 = arith.constant 0 : index
    %50 = vector.load %arg5[%c0_15, %c0_16] : memref<1x1xf32, #tpu.memory_space<vmem>>, vector<1x1xf32>
    tpu.vector_store %arg5[%c0_15, %c0_16], %49 {strides = array<i32>} : memref<1x1xf32, #tpu.memory_space<vmem>>, vector<1x1xf32>,
    %c0_i32_17 = arith.constant 0 : i32
    %51 = arith.cmpi eq, %arg1, %c0_i32_17 : i32
    %52 = arith.extui %51 : i1 to i32
    %c0_i32_18 = arith.constant 0 : i32
    %53 = arith.cmpi ne, %52, %c0_i32_18 : i32
    scf.if %53 {
      %c0_19 = arith.constant 0 : index
      %c0_20 = arith.constant 0 : index
      %54 = vector.load %arg4[%c0_19, %c0_20] : memref<4x16xf32, #tpu.memory_space<vmem>>, vector<4x16xf32>
      %cst_21 = arith.constant dense<0.000000e+00> : vector<16xf32>
      %55 = vector.multi_reduction <add>, %54, %cst_21 [0] : vector<4x16xf32> to vector<16xf32>
      %cst_22 = arith.constant 4.000000e+00 : f32
      %56 = vector.broadcast %cst_22 : f32 to vector<16xf32>
      %57 = arith.divf %55, %56 : vector<16xf32>
      %cst_23 = arith.constant dense<0.000000e+00> : vector<16x16xf32>
      %58 = tpu.matmul %54, %54, %cst_23 {dimension_numbers = #tpu.dot_dimension_numbers<[0], [0], [1], [1], [0, 1, 1, 1], [], []>} : vector<4x16xf32>, vector<4x16xf32>, vector<16x16xf32> -> vector<16x16xf32>
      %cst_24 = arith.constant 4.000000e+00 : f32
      %59 = vector.broadcast %cst_24 : f32 to vector<16x16xf32>
      %60 = arith.divf %58, %59 : vector<16x16xf32>
      %61 = tpu.iota {dimensions = array<i32: 0>} : vector<16x16xi32>
      %62 = tpu.iota {dimensions = array<i32: 1>} : vector<16x16xi32>
      %c0_i32_25 = arith.constant 0 : i32
      %63 = vector.broadcast %c0_i32_25 : i32 to vector<16x16xi32>
      %64 = arith.addi %61, %63 : vector<16x16xi32>
      %65 = arith.cmpi eq, %64, %62 : vector<16x16xi32>
      %66 = arith.extui %65 : vector<16x16xi1> to vector<16x16xi32>
      %67 = arith.sitofp %66 : vector<16x16xi32> to vector<16x16xf32>
      %68 = arith.subf %60, %67 : vector<16x16xf32>
      %69 = math.tanh %68 : vector<16x16xf32>
      %70 = arith.mulf %69, %68 : vector<16x16xf32>
      %71 = arith.mulf %57, %57 : vector<16xf32>
      %72 = vector.shape_cast %71 : vector<16xf32> to vector<1x16xf32>
      %cst_26 = arith.constant dense<0.000000e+00> : vector<1xf32>
      %73 = vector.multi_reduction <add>, %72, %cst_26 [1] : vector<1x16xf32> to vector<1xf32>
      %74 = vector.shape_cast %73 : vector<1xf32> to vector<1x1xf32>
      %75 = vector.extract %74[0, 0] : f32 from vector<1x1xf32>
      %cst_27 = arith.constant 1.600000e+01 : f32
      %76 = arith.divf %75, %cst_27 : f32
      %77 = vector.shape_cast %70 : vector<16x16xf32> to vector<1x16x16xf32>
      %cst_28 = arith.constant dense<0.000000e+00> : vector<1xf32>
      %78 = vector.multi_reduction <add>, %77, %cst_28 [1, 2] : vector<1x16x16xf32> to vector<1xf32>
      %79 = vector.shape_cast %78 : vector<1xf32> to vector<1x1x1xf32>
      %80 = vector.extract %79[0, 0, 0] : f32 from vector<1x1x1xf32>
      %cst_29 = arith.constant 2.560000e+02 : f32
      %81 = arith.divf %80, %cst_29 : f32
      %82 = arith.addf %76, %81 : f32
      %83 = vector.broadcast %82 : f32 to vector<1x1xf32>
      %c0_30 = arith.constant 0 : index
      %c0_31 = arith.constant 0 : index
      %84 = vector.load %arg6[%c0_30, %c0_31] : memref<1x1xf32, #tpu.memory_space<vmem>>, vector<1x1xf32>
      tpu.vector_store %arg6[%c0_30, %c0_31], %83 {strides = array<i32>} : memref<1x1xf32, #tpu.memory_space<vmem>>, vector<1x1xf32>,
    } else {
    }
    return
  }
  func.func @transform_0(%arg0: i32, %arg1: i32) -> (i32, i32) {
    %c1_i32 = arith.constant 1 : i32
    %0 = arith.muli %arg0, %c1_i32 : i32
    %1 = arith.addi %0, %arg1 : i32
    %c0_i32 = arith.constant 0 : i32
    %2 = arith.minsi %1, %c0_i32 : i32
    %c0_i32_0 = arith.constant 0 : i32
    %c0_i32_1 = arith.constant 0 : i32
    return %2, %c0_i32_0 : i32, i32
  }
  func.func @transform_1(%arg0: i32, %arg1: i32) -> (i32, i32) {
    %c1_i32 = arith.constant 1 : i32
    %0 = arith.muli %arg0, %c1_i32 : i32
    %1 = arith.addi %0, %arg1 : i32
    %c0_i32 = arith.constant 0 : i32
    %2 = arith.minsi %1, %c0_i32 : i32
    %c0_i32_0 = arith.constant 0 : i32
    %c0_i32_1 = arith.constant 0 : i32
    return %2, %c0_i32_0 : i32, i32
  }
  func.func @transform_2(%arg0: i32, %arg1: i32) -> (i32, i32) {
    %c0_i32 = arith.constant 0 : i32
    %c0_i32_0 = arith.constant 0 : i32
    %c0_i32_1 = arith.constant 0 : i32
    return %c0_i32, %c0_i32_0 : i32, i32
  }
  func.func @transform_3(%arg0: i32, %arg1: i32) -> (i32, i32) {
    %c0_i32 = arith.constant 0 : i32
    %c0_i32_0 = arith.constant 0 : i32
    return %arg0, %c0_i32 : i32, i32
  }
  func.func @transform_4(%arg0: i32, %arg1: i32) -> (i32, i32) {
    %c0_i32 = arith.constant 0 : i32
    %c0_i32_0 = arith.constant 0 : i32
    return %arg0, %c0_i32 : i32, i32
  }
}

</mosaic_0001>

<llo_original>
// kernel: vae_loss.1
$region0: #{vae_loss.1}
  #allocation0 [shape = 'u32[]', space=smem, size = 0x4, offset = 0x4, fixed_abs, tag = 'smem constant byte address 0x4 - core index']
  #allocation1 [shape = 'u32[144,128]{1,0:T(1,128)}', space=vmem, size = 0x12000, scoped, tag = 'internal scratch']
  %s0 = inlined_call_operand.hbm [shape: f32[32,32], index: 0, kind: input, shape index: {}]
  %s1 = inlined_call_operand.hbm [shape: f32[32,32], index: 1, kind: input, shape index: {}]
  %s2 = inlined_call_operand.hbm [shape: f32[4,16], index: 2, kind: input, shape index: {}]
  %s3 = inlined_call_operand.hbm [shape: f32[1,1], index: 3, kind: output, shape index: {0}]
  %s4 = inlined_call_operand.hbm [shape: f32[1,1], index: 4, kind: output, shape index: {1}]
  %5 = xla_tuple %s3, %s4
  %s6 = sld [smem:[#allocation0]]
  $region50: #{vae_loss.1} parent=0
    _
  %s8 = ssub.s32 1, %s6
  %s9 = scalar_select 0, %s8, %s6
  $region1: #{vae_loss.1} parent=0
    #allocation2 [shape = 'u8[16384]{0}', space=vmem, size = 0x4000, scoped, tag = 'input window, operand 0, single buffered']
    #allocation3 [shape = 's32[1]{0}', space=sflag, size = 0x4, scoped, tag = 'scoped memory for vae_loss.1']
    #allocation4 [shape = 's32[1]{0}', space=sflag, size = 0x4, scoped, tag = 'scoped memory for vae_loss.1']
    #allocation5 [shape = 'u8[16384]{0}', space=vmem, size = 0x4000, scoped, tag = 'input window, operand 1, single buffered']
    #allocation6 [shape = 's32[1]{0}', space=sflag, size = 0x4, scoped, tag = 'scoped memory for vae_loss.1']
    #allocation7 [shape = 'u8[2048]{0}', space=vmem, size = 0x800, scoped, tag = 'input window, operand 2, single buffered']
    #allocation8 [shape = 'u8[512]{0}', space=vmem, size = 0x400, scoped, tag = 'output window, operand 0, single buffered']
    #allocation9 [shape = 'u8[512]{0}', space=vmem, size = 0x400, scoped, tag = 'output window, operand 1, single buffered']
    #allocation10 [shape = 's32[1]{0}', space=sflag, size = 0x4, scoped, tag = 'scoped memory for vae_loss.1']
    %10 = vsyncpa [#allocation3], 0
    %11 = vsyncpa [#allocation6], 0
    %12 = vsyncpa [#allocation4], 0
    %13 = vsyncpa [#allocation10], 0
    // Predicated region
    $region2: #{vae_loss.1} parent=1 // pred_check
      _
    $region3: #{vae_loss.1} parent=1 // pred_check_branch
      %15 = sbr.rel (0) target = $region5
    $region4: #{vae_loss.1} parent=1 // pred_region
      %s16 = sadd.s32 0, 0
      %p17 = scmp.lt.s32.totalorder %s16, 0
      %s18 = scalar_select %p17, %s16, 0
      %s19 = smul.u32 4, %s18
      %s21 = ssub.s32 512, 512
      %22 = vsyncadd [#allocation3], %s21
      %s23 = smul.addr %s19, 128
      %s24 = scalar_lea.hbm %s0, %s23
      %s25 = sshll.u32 [#allocation2], 4
      %s26 = int_to_ptr.vmem [resolvable:$true] %s25
      %31 = dma.hbm_to_vmem [thread:$0]  %s24, 512, %s26, [#allocation3], 128, 128, 8
    $region5: #{vae_loss.1} parent=1 // pred_fallthru
      _
    // Predicated region
    $region6: #{vae_loss.1} parent=1 // pred_check
      _
    $region7: #{vae_loss.1} parent=1 // pred_check_branch
      %33 = sbr.rel (0) target = $region9
    $region8: #{vae_loss.1} parent=1 // pred_region
      %s34 = sadd.s32 0, 0
      %p35 = scmp.lt.s32.totalorder %s34, 0
      %s36 = scalar_select %p35, %s34, 0
      %s37 = smul.u32 4, %s36
      %s39 = ssub.s32 512, 512
      %40 = vsyncadd [#allocation6], %s39
      %s41 = smul.addr %s37, 128
      %s42 = scalar_lea.hbm %s1, %s41
      %s43 = sshll.u32 [#allocation5], 4
      %s44 = int_to_ptr.vmem [resolvable:$true] %s43
      %49 = dma.hbm_to_vmem [thread:$0]  %s42, 512, %s44, [#allocation6], 128, 128, 8
    $region9: #{vae_loss.1} parent=1 // pred_fallthru
      _
    // Predicated region
    $region10: #{vae_loss.1} parent=1 // pred_check
      _
    $region11: #{vae_loss.1} parent=1 // pred_check_branch
      %51 = sbr.rel (0) target = $region13
    $region12: #{vae_loss.1} parent=1 // pred_region
      %s53 = ssub.s32 64, 64
      %54 = vsyncadd [#allocation6], %s53
      %s56 = sshll.u32 [#allocation7], 4
      %s57 = int_to_ptr.vmem [resolvable:$true] %s56
      %59 = dma.hbm_to_vmem [thread:$0]  %s2, 64, %s57, [#allocation6]
    $region13: #{vae_loss.1} parent=1 // pred_fallthru
      _
    // Predicated region
    $region14: #{vae_loss.1} parent=1 // pred_check
      _
    $region15: #{vae_loss.1} parent=1 // pred_check_branch
      %61 = sbr.rel (0) target = $region17
    $region16: #{vae_loss.1} parent=1 // pred_region
      %62 = dma.done [#allocation3], 512
    $region17: #{vae_loss.1} parent=1 // pred_fallthru
      _
    // Predicated region
    $region18: #{vae_loss.1} parent=1 // pred_check
      _
    $region19: #{vae_loss.1} parent=1 // pred_check_branch
      %64 = sbr.rel (0) target = $region21
    $region20: #{vae_loss.1} parent=1 // pred_region
      %65 = dma.done [#allocation6], 512
    $region21: #{vae_loss.1} parent=1 // pred_fallthru
      _
    // Predicated region
    $region22: #{vae_loss.1} parent=1 // pred_check
      _
    $region23: #{vae_loss.1} parent=1 // pred_check_branch
      %67 = sbr.rel (0) target = $region25
    $region24: #{vae_loss.1} parent=1 // pred_region
      %68 = dma.done [#allocation6], 64
    $region25: #{vae_loss.1} parent=1 // pred_fallthru
      _
    %s69 = sadd.s32 0, 0
    %p70 = scmp.lt.s32.totalorder %s69, 0
    %s71 = scalar_select %p70, %s69, 0
    %s72 = smul.u32 4, %s71
    %s73 = sadd.s32 0, 0
    %p74 = scmp.lt.s32.totalorder %s73, 0
    %s75 = scalar_select %p74, %s73, 0
    %s76 = smul.u32 4, %s75
    %p77 = scmp.eq.s32.totalorder 0, 0
    // Predicated region
    $region26: #{vae_loss.1} parent=1 // pred_check
      %p78 = pneg %p77
    $region27: #{vae_loss.1} parent=1 // pred_check_branch
      %80 = sbr.rel (%p78) target = $region29
    $region28: #{vae_loss.1} parent=1 // pred_region
      %vm81 = vcmask 0
      %82 = vst.msk [vmem:[#allocation8] sm:$0x1] %vm81, 0.0
    $region29: #{vae_loss.1} parent=1 // pred_fallthru
      _
    %v83 = vld [vmem:[#allocation2] sm:$0xff]
    %v84 = vld [vmem:[#allocation2 + $0x8] sm:$0xff]
    %v85 = vld [vmem:[#allocation2 + $0x10] sm:$0xff]
    %v86 = vld [vmem:[#allocation2 + $0x18] sm:$0xff]
    %v87 = vld [vmem:[#allocation5] sm:$0xff]
    %v88 = vld [vmem:[#allocation5 + $0x8] sm:$0xff]
    %v89 = vld [vmem:[#allocation5 + $0x10] sm:$0xff]
    %v90 = vld [vmem:[#allocation5 + $0x18] sm:$0xff]
    %vm91 = vcmask 261120
    %v92 = vsel %vm91, %v83, -inf
    %93 = vmax.xlane.f32.xlu0 %v92
    %v94 = vpop.xlane.xlu0 %93
    %v95 = vsel %vm91, %v84, -inf
    %96 = vmax.xlane.f32.xlu0 %v95
    %v97 = vpop.xlane.xlu0 %96
    %v98 = vsel %vm91, %v85, -inf
    %99 = vmax.xlane.f32.xlu0 %v98
    %v100 = vpop.xlane.xlu0 %99
    %v101 = vsel %vm91, %v86, -inf
    %102 = vmax.xlane.f32.xlu0 %v101
    %v103 = vpop.xlane.xlu0 %102
    %v104 = vsub.f32 %v83, %v94
    %v105 = vsub.f32 %v84, %v97
    %v106 = vsub.f32 %v85, %v100
    %v107 = vsub.f32 %v86, %v103
    %v108 = vmul.f32 %v104, 1.442695
    %v109 = vpow.pop %v108
    %v110 = vmul.f32 %v105, 1.442695
    %v111 = vpow.pop %v110
    %v112 = vmul.f32 %v106, 1.442695
    %v113 = vpow.pop %v112
    %v114 = vmul.f32 %v107, 1.442695
    %v115 = vpow.pop %v114
    %v116 = vsel %vm91, %v109, 0.0
    %117 = vadd.xlane.f32.xlu0 %v116
    %v118 = vpop.xlane.xlu0 %117
    %v119 = vsel %vm91, %v111, 0.0
    %120 = vadd.xlane.f32.xlu0 %v119
    %v121 = vpop.xlane.xlu0 %120
    %v122 = vsel %vm91, %v113, 0.0
    %123 = vadd.xlane.f32.xlu0 %v122
    %v124 = vpop.xlane.xlu0 %123
    %v125 = vsel %vm91, %v115, 0.0
    %126 = vadd.xlane.f32.xlu0 %v125
    %v127 = vpop.xlane.xlu0 %126
    %v128 = vlog2.pop %v118
    %v129 = vmul.f32 %v128, 0.6931472
    %v130 = vlog2.pop %v121
    %v131 = vmul.f32 %v130, 0.6931472
    %v132 = vlog2.pop %v124
    %v133 = vmul.f32 %v132, 0.6931472
    %v134 = vlog2.pop %v127
    %v135 = vmul.f32 %v134, 0.6931472
    %v136 = vsub.f32 %v104, %v129
    %v137 = vsub.f32 %v105, %v131
    %v138 = vsub.f32 %v106, %v133
    %v139 = vsub.f32 %v107, %v135
    %v140 = vmax.f32 %v136, -100.0
    %v141 = vmax.f32 %v137, -100.0
    %v142 = vmax.f32 %v138, -100.0
    %v143 = vmax.f32 %v139, -100.0
    %v144 = vsub.f32 %v118, %v109
    %v145 = vsub.f32 %v121, %v111
    %v146 = vsub.f32 %v124, %v113
    %v147 = vsub.f32 %v127, %v115
    %v148 = vmax.f32 %v144, 0.0
    %v149 = vmax.f32 %v145, 0.0
    %v150 = vmax.f32 %v146, 0.0
    %v151 = vmax.f32 %v147, 0.0
    %v152 = vlog2.pop %v148
    %v153 = vmul.f32 %v152, 0.6931472
    %v154 = vlog2.pop %v149
    %v155 = vmul.f32 %v154, 0.6931472
    %v156 = vlog2.pop %v150
    %v157 = vmul.f32 %v156, 0.6931472
    %v158 = vlog2.pop %v151
    %v159 = vmul.f32 %v158, 0.6931472
    %v160 = vsub.f32 %v153, %v129
    %v161 = vsub.f32 %v155, %v131
    %v162 = vsub.f32 %v157, %v133
    %v163 = vsub.f32 %v159, %v135
    %v164 = vmax.f32 %v160, -100.0
    %v165 = vmax.f32 %v161, -100.0
    %v166 = vmax.f32 %v162, -100.0
    %v167 = vmax.f32 %v163, -100.0
    %v168 = vsub.f32 %v140, %v164
    %v169 = vsub.f32 %v141, %v165
    %v170 = vsub.f32 %v142, %v166
    %v171 = vsub.f32 %v143, %v167
    %v172 = vmul.f32 %v87, %v168
    %v173 = vmul.f32 %v88, %v169
    %v174 = vmul.f32 %v89, %v170
    %v175 = vmul.f32 %v90, %v171
    %v176 = vadd.f32 %v164, %v172
    %v177 = vadd.f32 %v165, %v173
    %v178 = vadd.f32 %v166, %v174
    %v179 = vadd.f32 %v167, %v175
    %v180 = vsub.f32 0.0, %v176
    %v181 = vsub.f32 0.0, %v177
    %v182 = vsub.f32 0.0, %v178
    %v183 = vsub.f32 0.0, %v179
    %v184 = vsel %vm91, %v180, 0.0
    %185 = vadd.xlane.f32.xlu0 %v184
    %v186 = vpop.xlane.xlu0 %185
    %v187 = vsel %vm91, %v181, 0.0
    %188 = vadd.xlane.f32.xlu0 %v187
    %v189 = vpop.xlane.xlu0 %188
    %v190 = vsel %vm91, %v182, 0.0
    %191 = vadd.xlane.f32.xlu0 %v190
    %v192 = vpop.xlane.xlu0 %191
    %v193 = vsel %vm91, %v183, 0.0
    %194 = vadd.xlane.f32.xlu0 %v193
    %v195 = vpop.xlane.xlu0 %194
    %s196 = sadd.s32 0, 0
    %s197 = smul.u32 %s196, 32
    %v198 = vlaneseq
    %v199 = vshrl.u32 %v198, 7
    %v200 = vadd.s32 %v199, 8
    %v201 = vadd.s32 %v199, 16
    %v202 = vadd.s32 %v199, 24
    %v203 = vstv %s197
    %v204 = vadd.s32 %v199, %v203
    %v205 = vadd.s32 %v200, %v203
    %v206 = vadd.s32 %v201, %v203
    %v207 = vadd.s32 %v202, %v203
    %vm208 = vcmp.lt.s32.totalorder %v204, 32
    %vm209 = vcmp.lt.s32.totalorder %v205, 32
    %vm210 = vcmp.lt.s32.totalorder %v206, 32
    %vm211 = vcmp.lt.s32.totalorder %v207, 32
    %v212 = vsel %vm208, %v186, 0.0
    %v213 = vsel %vm209, %v189, 0.0
    %v214 = vsel %vm210, %v192, 0.0
    %v215 = vsel %vm211, %v195, 0.0
    %v216 = vld [vmem:[#allocation8] sm:$0x1]
    %vm217 = vcmask 7168
    %v218 = vsel %vm217, %v212, 0.0
    %v219 = vsel %vm217, %v213, 0.0
    %v220 = vadd.f32 %v218, %v219
    %v221 = vsel %vm217, %v214, 0.0
    %v222 = vadd.f32 %v220, %v221
    %v223 = vsel %vm217, %v215, 0.0
    %v224 = vadd.f32 %v222, %v223
    %225 = vadd.xlane.f32.xlu0 %v224
    %v226 = vpop.xlane.xlu0 %225
    %v227 = vrot.slane %v226, 4
    %v228 = vadd.f32 %v226, %v227
    %v229 = vrot.slane %v228, 2
    %v230 = vadd.f32 %v228, %v229
    %v231 = vrot.slane %v230, 1
    %v232 = vadd.f32 %v230, %v231
    %s233 = vtos %v232
    %v234 = vstv %s233
    %v235 = vadd.f32 %v216, %v234
    %vm236 = vcmask 0
    %237 = vst.msk [vmem:[#allocation8] sm:$0x1] %vm236, %v235
    // Predicated region
    $region30: #{vae_loss.1} parent=1 // pred_check
      %p238 = pneg %p77
    $region31: #{vae_loss.1} parent=1 // pred_check_branch
      %240 = sbr.rel (%p238) target = $region33
    $region32: #{vae_loss.1} parent=1 // pred_region
      %v241 = vld [vmem:[#allocation7] sm:$0xf]
      %vm242 = vcmask 125952
      %v243 = vsel %vm242, %v241, 0.0
      %v244 = vrot.slane %v243, 4
      %v245 = vadd.f32 %v243, %v244
      %v246 = vrot.slane %v245, 2
      %v247 = vadd.f32 %v245, %v246
      %v248 = vrot.slane %v247, 1
      %v249 = vadd.f32 %v247, %v248
      %v250 = vrcp.pop 4.0
      %v251 = vmul.f32 %v249, %v250
      %252 = vxpose.xlu0.b32.start [1/16] %v241, 128
      %253 = vxpose.xlu0.b32.cont [2/16] 0.0, 128
      %254 = vxpose.xlu0.b32.cont [3/16] 0.0, 128
      %255 = vxpose.xlu0.b32.cont [4/16] 0.0, 128
      %256 = vxpose.xlu0.b32.cont [5/16] 0.0, 128
      %257 = vxpose.xlu0.b32.cont [6/16] 0.0, 128
      %258 = vxpose.xlu0.b32.cont [7/16] 0.0, 128
      %259 = vxpose.xlu0.b32.cont [8/16] 0.0, 128
      %260 = vxpose.xlu0.b32.cont [9/16] 0.0, 128
      %261 = vxpose.xlu0.b32.cont [10/16] 0.0, 128
      %262 = vxpose.xlu0.b32.cont [11/16] 0.0, 128
      %263 = vxpose.xlu0.b32.cont [12/16] 0.0, 128
      %264 = vxpose.xlu0.b32.cont [13/16] 0.0, 128
      %265 = vxpose.xlu0.b32.cont [14/16] 0.0, 128
      %266 = vxpose.xlu0.b32.cont [15/16] 0.0, 128
      %267 = vxpose.xlu0.b32.end [16/16] 0.0, 128
      %v268 = vpop.trf.xlu0
      %v269 = vpop.trf.xlu0
      %v270 = vpop.trf.xlu0
      %v271 = vpop.trf.xlu0
      %v272 = vpop.trf.xlu0
      %v273 = vpop.trf.xlu0
      %v274 = vpop.trf.xlu0
      %v275 = vpop.trf.xlu0
      %v276 = vpop.trf.xlu0
      %v277 = vpop.trf.xlu0
      %v278 = vpop.trf.xlu0
      %v279 = vpop.trf.xlu0
      %v280 = vpop.trf.xlu0
      %v281 = vpop.trf.xlu0
      %v282 = vpop.trf.xlu0
      %v283 = vpop.trf.xlu0
      %vm284 = vcmask 31744
      %v286 = vsel %vm284, %v268, 0
      %v289 = vsel %vm284, %v269, 0
      %vm291 = vcmask 1043456
      %v293 = vsel %vm291, %v241, 0
      %295 = vmatprep.subr.mxu0 0.0
      %296 = vmatpush1.msra.mxu0 0.0
      %297 = vmatprep.subr.mxu0 0.0
      %298 = vmatpush1.msra.mxu0 0.0
      %299 = vmatprep.subr.mxu0 0.0
      %300 = vmatpush1.msra.mxu0 0.0
      %301 = vmatprep.subr.mxu0 0.0
      %302 = vmatpush1.msra.mxu0 0.0
      %303 = vmatprep.subr.mxu0 0.0
      %304 = vmatpush1.msra.mxu0 0.0
      %305 = vmatprep.subr.mxu0 0.0
      %306 = vmatpush1.msra.mxu0 0.0
      %307 = vmatprep.subr.mxu0 0.0
      %308 = vmatpush1.msra.mxu0 0.0
      %309 = vmatprep.subr.mxu0 0.0
      %310 = vmatpush1.msra.mxu0 0.0
      %311 = vmatprep.subr.mxu0 0.0
      %312 = vmatpush1.msra.mxu0 0.0
      %313 = vmatprep.subr.mxu0 0.0
      %314 = vmatpush1.msra.mxu0 0.0
      %315 = vmatprep.subr.mxu0 0.0
      %316 = vmatpush1.msra.mxu0 0.0
      %317 = vmatprep.subr.mxu0 0.0
      %318 = vmatpush1.msra.mxu0 0.0
      %319 = vmatprep.subr.mxu0 0.0
      %320 = vmatpush1.msra.mxu0 0.0
      %321 = vmatprep.subr.mxu0 0.0
      %322 = vmatpush1.msra.mxu0 0.0
      %323 = vmatprep.subr.mxu0 0.0
      %324 = vmatpush1.msra.mxu0 0.0
      %325 = vmatprep.subr.mxu0 0.0
      %326 = vmatpush1.msra.mxu0 %v293
      %327 = vmatprep.subr.mxu0 0.0
      %328 = vmatpush2.msra.mxu0 0.0
      %329 = vmatprep.subr.mxu0 0.0
      %330 = vmatpush2.msra.mxu0 0.0
      %331 = vmatprep.subr.mxu0 0.0
      %332 = vmatpush2.msra.mxu0 0.0
      %333 = vmatprep.subr.mxu0 0.0
      %334 = vmatpush2.msra.mxu0 0.0
      %335 = vmatprep.subr.mxu0 0.0
      %336 = vmatpush2.msra.mxu0 0.0
      %337 = vmatprep.subr.mxu0 0.0
      %338 = vmatpush2.msra.mxu0 0.0
      %339 = vmatprep.subr.mxu0 0.0
      %340 = vmatpush2.msra.mxu0 0.0
      %341 = vmatprep.subr.mxu0 0.0
      %342 = vmatpush2.msra.mxu0 0.0
      %343 = vmatprep.subr.mxu0 0.0
      %344 = vmatpush2.msra.mxu0 0.0
      %345 = vmatprep.subr.mxu0 0.0
      %346 = vmatpush2.msra.mxu0 0.0
      %347 = vmatprep.subr.mxu0 0.0
      %348 = vmatpush2.msra.mxu0 0.0
      %349 = vmatprep.subr.mxu0 0.0
      %350 = vmatpush2.msra.mxu0 0.0
      %351 = vmatprep.subr.mxu0 0.0
      %352 = vmatpush2.msra.mxu0 0.0
      %353 = vmatprep.subr.mxu0 0.0
      %354 = vmatpush2.msra.mxu0 0.0
      %355 = vmatprep.subr.mxu0 0.0
      %356 = vmatpush2.msra.mxu0 0.0
      %357 = vmatprep.subr.mxu0 0.0
      %358 = vmatpush2.msra.mxu0 0.0
      %359 = vmatprep.mubr.f32.mxu0 0.0
      %360 = vmatmul.mubr.f32.gmra.mxu0 %v286
      %v361 = vpop.f32.mrf.mxu0
      %v362 = vadd.f32 0.0, %v361
      %v363 = vpop.f32.mrf.mxu0
      %364 = vmatprep.mubr.f32.mxu0 0.0
      %365 = vmatmul.mubr.f32.gmra.mxu0 %v289
      %v366 = vpop.f32.mrf.mxu0
      %v367 = vadd.f32 0.0, %v366
      %v368 = vpop.f32.mrf.mxu0
      %369 = vdwg.mxu0
      %v370 = vmul.f32 %v362, %v250
      %v371 = vmul.f32 %v367, %v250
      %v372 = vlaneseq
      %v373 = vand.u32 %v372, 127
      %vm374 = vcmp.eq.s32.totalorder %v199, %v373
      %vm375 = vcmp.eq.s32.totalorder %v200, %v373
      %v376 = vsel %vm374, 1, 0
      %v377 = vsel %vm375, 1, 0
      %v378 = vcvt.s32.f32 %v376
      %v379 = vcvt.s32.f32 %v377
      %v380 = vsub.f32 %v370, %v378
      %v381 = vsub.f32 %v371, %v379
      %v382 = vtanh.pop %v380
      %v383 = vtanh.pop %v381
      %v384 = vmul.f32 %v382, %v380
      %v385 = vmul.f32 %v383, %v381
      %v386 = vmul.f32 %v251, %v251
      %vm387 = vcmask 130048
      %v388 = vsel %vm387, %v386, 0.0
      %389 = vadd.xlane.f32.xlu0 %v388
      %v390 = vpop.xlane.xlu0 %389
      %s391 = vtos %v390
      %v392 = vrcp.pop 16.0
      %s393 = vtos %v392
      %s394 = smul.f32 %s391, %s393
      %v395 = vsel %vm387, %v384, 0.0
      %v396 = vsel %vm387, %v385, 0.0
      %v397 = vadd.f32 %v395, %v396
      %398 = vadd.xlane.f32.xlu0 %v397
      %v399 = vpop.xlane.xlu0 %398
      %v400 = vrot.slane %v399, 4
      %v401 = vadd.f32 %v399, %v400
      %v402 = vrot.slane %v401, 2
      %v403 = vadd.f32 %v401, %v402
      %v404 = vrot.slane %v403, 1
      %v405 = vadd.f32 %v403, %v404
      %s406 = vtos %v405
      %v407 = vrcp.pop 256.0
      %s408 = vtos %v407
      %s409 = smul.f32 %s406, %s408
      %s410 = sadd.f32 %s394, %s409
      %v411 = vstv %s410
      %412 = vst.msk [vmem:[#allocation9] sm:$0x1] %vm236, %v411
    $region33: #{vae_loss.1} parent=1 // pred_fallthru
      _
    // Predicated region
    $region34: #{vae_loss.1} parent=1 // pred_check
      _
    $region35: #{vae_loss.1} parent=1 // pred_check_branch
      %414 = sbr.rel (0) target = $region37
    $region36: #{vae_loss.1} parent=1 // pred_region
      %s416 = ssub.s32 16, 16
      %417 = vsyncadd [#allocation4], %s416
      %s419 = sshll.u32 [#allocation8], 4
      %s420 = int_to_ptr.vmem [resolvable:$true] %s419
      %422 = dma.vmem_to_hbm [thread:$0]  %s420, 16, %s3, [#allocation4]
    $region37: #{vae_loss.1} parent=1 // pred_fallthru
      _
    // Predicated region
    $region38: #{vae_loss.1} parent=1 // pred_check
      _
    $region39: #{vae_loss.1} parent=1 // pred_check_branch
      %424 = sbr.rel (0) target = $region41
    $region40: #{vae_loss.1} parent=1 // pred_region
      %s426 = ssub.s32 16, 16
      %427 = vsyncadd [#allocation10], %s426
      %s429 = sshll.u32 [#allocation9], 4
      %s430 = int_to_ptr.vmem [resolvable:$true] %s429
      %432 = dma.vmem_to_hbm [thread:$0]  %s430, 16, %s4, [#allocation10]
    $region41: #{vae_loss.1} parent=1 // pred_fallthru
      _
    // Predicated region
    $region42: #{vae_loss.1} parent=1 // pred_check
      _
    $region43: #{vae_loss.1} parent=1 // pred_check_branch
      %434 = sbr.rel (0) target = $region45
    $region44: #{vae_loss.1} parent=1 // pred_region
      %435 = dma.done [#allocation4], 16
    $region45: #{vae_loss.1} parent=1 // pred_fallthru
      _
    // Predicated region
    $region46: #{vae_loss.1} parent=1 // pred_check
      _
    $region47: #{vae_loss.1} parent=1 // pred_check_branch
      %437 = sbr.rel (0) target = $region49
    $region48: #{vae_loss.1} parent=1 // pred_region
      %438 = dma.done [#allocation10], 16
    $region49: #{vae_loss.1} parent=1 // pred_fallthru
      _
    %439 = vsyncpa [#allocation3], 1
    %440 = vsyncpa [#allocation6], 1
    %441 = vsyncpa [#allocation4], 1
    %442 = vsyncpa [#allocation10], 1

</llo_original>
